<compile_context>
chip_gen: v7x
topology: tpu7x:2x2x1
jax: 0.10.0
libtpu: 0.0.40
codegen_flags: <defaults>
</compile_context>

<pallas_src>
import jax
import jax.numpy as jnp
from jax.experimental import pallas as pl
from jax.experimental.pallas import tpu as pltpu

_EPS = 1e-8          # nn.CosineSimilarity default eps
_EPS2 = _EPS * _EPS


def _round_up(x: int, m: int) -> int:
    return ((x + m - 1) // m) * m


def _choose_tb(B: int, D: int, itemsize: int) -> int:
    """Rows per batch block."""
    if B < 256:
        # Single block exactly covering the array: block dims == full dims,
        # so no (8, 128) divisibility or masking concerns for tiny batches.
        return B
    # ~4 MiB per input block; TB a multiple of 128 so the (1, TB) output
    # block is lane-dense (unmasked vst) even when it does not cover all of B.
    target_bytes = 4 * 1024 * 1024
    rows = (target_bytes // max(D * itemsize, 1)) // 128 * 128
    rows = max(rows, 128)
    # Ensure >= 2 blocks so the "parallel" axis can split across v7x's 2 TCs.
    half = _round_up(pl.cdiv(B, 2), 128)
    return min(rows, half)


def _cosine_loss_kernel(x_ref, y_ref, o_ref):
    # (TB, D) tiles in VMEM. Elementwise products on the VPU, row reductions
    # on the XLU (lane-major (TB,) results), rsqrt on the EUP.
    x = x_ref[...].astype(jnp.float32)
    y = y_ref[...].astype(jnp.float32)

    dot = jnp.sum(x * y, axis=-1)       # (TB,)
    sxx = jnp.sum(x * x, axis=-1)       # ||x||^2
    syy = jnp.sum(y * y, axis=-1)       # ||y||^2

    # dot / (max(||x||, eps) * max(||y||, eps))  -- per-norm clamp, no overflow.
    inv = jax.lax.rsqrt(jnp.maximum(sxx, _EPS2)) * jax.lax.rsqrt(
        jnp.maximum(syy, _EPS2))
    loss = 1.0 - dot * inv              # (TB,), lane-major

    # Lane-dense store: one (1, TB) row per grid step.
    o_ref[...] = jnp.reshape(loss, (1, -1)).astype(o_ref.dtype)


def cosine_loss(embeddings: jax.Array, targets: jax.Array) -> jax.Array:
    """1 - cosine_similarity(embeddings, targets) over axis 1. Returns (B,) f32."""
    assert embeddings.shape == targets.shape and embeddings.ndim == 2
    B, D = embeddings.shape
    itemsize = jnp.dtype(embeddings.dtype).itemsize

    TB = _choose_tb(B, D, itemsize)
    nb = pl.cdiv(B, TB)                 # ragged last block handled in-kernel

    block_bytes = TB * D * itemsize
    # 2 inputs x 2 pipeline buffers + headroom; >= 32 MiB covers v5e's 16 MiB
    # scoped default, <= 48 MiB stays safely under v7x's 64 MiB physical VMEM.
    vmem_limit = max(32 * 1024 * 1024, 4 * block_bytes + 2 * 1024 * 1024)
    # TODO(synk): for very large D, add a second ("arbitrary") grid axis over D
    # with VMEM accumulators for dot/sxx/syy instead of widening the block.
    assert vmem_limit <= 48 * 1024 * 1024, (
        f"D={D} needs ~{vmem_limit / 2**20:.0f} MiB VMEM; tile the D axis")

    cost = pl.CostEstimate(
        flops=6 * B * D,                # 3 muls + 3 adds per element
        transcendentals=2 * B,          # two rsqrt per row
        bytes_accessed=2 * B * D * itemsize + 4 * B,
    )

    out = pl.pallas_call(
        _cosine_loss_kernel,
        out_shape=jax.ShapeDtypeStruct((1, B), jnp.float32),
        grid=(nb,),
        in_specs=[
            pl.BlockSpec((TB, D), lambda i: (i, 0)),
            pl.BlockSpec((TB, D), lambda i: (i, 0)),
        ],
        out_specs=pl.BlockSpec((1, TB), lambda i: (0, i)),
        compiler_params=pltpu.CompilerParams(
            dimension_semantics=("parallel",),   # batch blocks are independent
            vmem_limit_bytes=int(vmem_limit),
        ),
        cost_estimate=cost,
    )(embeddings, targets)

    return out[0]   # (B,), same as PyTorch nn.CosineSimilarity output


def _reference(embeddings, targets):
    e = embeddings.astype(jnp.float32)
    t = targets.astype(jnp.float32)
    dot = jnp.sum(e * t, axis=1)
    nx = jnp.maximum(jnp.sqrt(jnp.sum(e * e, axis=1)), _EPS)
    ny = jnp.maximum(jnp.sqrt(jnp.sum(t * t, axis=1)), _EPS)
    return 1.0 - dot / (nx * ny)


if __name__ == "__main__":
    key = jax.random.PRNGKey(0)
    k1, k2, k3, k4 = jax.random.split(key, 4)

    # Small, module-consistent shapes: a batch of embedding vectors.
    B, D = 8, 128
    embeddings = jax.random.normal(k1, (B, D), dtype=jnp.float32)
    targets = jax.random.normal(k2, (B, D), dtype=jnp.float32)

    loss = jax.block_until_ready(cosine_loss(embeddings, targets))
    ref = _reference(embeddings, targets)
    assert loss.shape == (B,)
    assert jnp.allclose(loss, ref, atol=1e-5, rtol=1e-5), (loss, ref)

    # Multi-block path: >= 2 parallel batch blocks, ragged (masked) last block,
    # no host-side padding of the inputs.
    B2, D2 = 2300, 128
    e2 = jax.random.normal(k3, (B2, D2), dtype=jnp.float32)
    t2 = jax.random.normal(k4, (B2, D2), dtype=jnp.float32)
    loss2 = jax.block_until_ready(cosine_loss(e2, t2))
    ref2 = _reference(e2, t2)
    assert loss2.shape == (B2,)
    assert jnp.allclose(loss2, ref2, atol=1e-5, rtol=1e-5)

    print("KERNEL_OK")
</pallas_src>

<mosaic_0001>
module attributes {stable_mosaic.version = 11 : i64} {
  func.func @_cosine_loss_kernel(%arg0: i32, %arg1: memref<8x128xf32, #tpu.memory_space<vmem>>, %arg2: memref<8x128xf32, #tpu.memory_space<vmem>>, %arg3: memref<1x8xf32, #tpu.memory_space<vmem>>) attributes {dimension_semantics = [#tpu.dimension_semantics<parallel>], iteration_bounds = array<i64: 1>, scalar_prefetch = 0 : i64, scratch_operands = 0 : i64, tpu.core_type = #tpu.core_type<tc>, window_params = [{transform_indices = @transform_0, window_bounds = array<i64: 8, 128>}, {transform_indices = @transform_1, window_bounds = array<i64: 8, 128>}, {transform_indices = @transform_2, window_bounds = array<i64: 1, 8>}]} {
    %c0 = arith.constant 0 : index
    %c0_0 = arith.constant 0 : index
    %0 = vector.load %arg1[%c0, %c0_0] : memref<8x128xf32, #tpu.memory_space<vmem>>, vector<8x128xf32>
    %c0_1 = arith.constant 0 : index
    %c0_2 = arith.constant 0 : index
    %1 = vector.load %arg2[%c0_1, %c0_2] : memref<8x128xf32, #tpu.memory_space<vmem>>, vector<8x128xf32>
    %2 = arith.mulf %0, %1 : vector<8x128xf32>
    %cst = arith.constant dense<0.000000e+00> : vector<8xf32>
    %3 = vector.multi_reduction <add>, %2, %cst [1] : vector<8x128xf32> to vector<8xf32>
    %4 = arith.mulf %0, %0 : vector<8x128xf32>
    %cst_3 = arith.constant dense<0.000000e+00> : vector<8xf32>
    %5 = vector.multi_reduction <add>, %4, %cst_3 [1] : vector<8x128xf32> to vector<8xf32>
    %6 = arith.mulf %1, %1 : vector<8x128xf32>
    %cst_4 = arith.constant dense<0.000000e+00> : vector<8xf32>
    %7 = vector.multi_reduction <add>, %6, %cst_4 [1] : vector<8x128xf32> to vector<8xf32>
    %cst_5 = arith.constant 1.000000e-16 : f32
    %8 = vector.broadcast %cst_5 : f32 to vector<8xf32>
    %9 = arith.maximumf %5, %8 : vector<8xf32>
    %10 = math.rsqrt %9 : vector<8xf32>
    %cst_6 = arith.constant 1.000000e-16 : f32
    %11 = vector.broadcast %cst_6 : f32 to vector<8xf32>
    %12 = arith.maximumf %7, %11 : vector<8xf32>
    %13 = math.rsqrt %12 : vector<8xf32>
    %14 = arith.mulf %10, %13 : vector<8xf32>
    %15 = arith.mulf %3, %14 : vector<8xf32>
    %cst_7 = arith.constant 1.000000e+00 : f32
    %16 = vector.broadcast %cst_7 : f32 to vector<8xf32>
    %17 = arith.subf %16, %15 : vector<8xf32>
    %18 = vector.shape_cast %17 : vector<8xf32> to vector<1x8xf32>
    %c0_8 = arith.constant 0 : index
    %c0_9 = arith.constant 0 : index
    %19 = vector.load %arg3[%c0_8, %c0_9] : memref<1x8xf32, #tpu.memory_space<vmem>>, vector<1x8xf32>
    tpu.vector_store %arg3[%c0_8, %c0_9], %18 {strides = array<i32>} : memref<1x8xf32, #tpu.memory_space<vmem>>, vector<1x8xf32>,
    return
  }
  func.func @transform_0(%arg0: i32) -> (i32, i32) {
    %c0_i32 = arith.constant 0 : i32
    %c0_i32_0 = arith.constant 0 : i32
    return %arg0, %c0_i32 : i32, i32
  }
  func.func @transform_1(%arg0: i32) -> (i32, i32) {
    %c0_i32 = arith.constant 0 : i32
    %c0_i32_0 = arith.constant 0 : i32
    return %arg0, %c0_i32 : i32, i32
  }
  func.func @transform_2(%arg0: i32) -> (i32, i32) {
    %c0_i32 = arith.constant 0 : i32
    %c0_i32_0 = arith.constant 0 : i32
    return %c0_i32, %arg0 : i32, i32
  }
}

</mosaic_0001>

<llo_original>
// kernel: tpu_custom_call.1
$region0: #{tpu_custom_call.1}
  #allocation0 [shape = 'u32[]', space=smem, size = 0x4, offset = 0x4, fixed_abs, tag = 'smem constant byte address 0x4 - core index']
  #allocation1 [shape = 'u32[144,128]{1,0:T(1,128)}', space=vmem, size = 0x12000, scoped, tag = 'internal scratch']
  %s0 = inlined_call_operand.hbm [shape: f32[8,128], index: 0, kind: input, shape index: {}]
  %s1 = inlined_call_operand.hbm [shape: f32[8,128], index: 1, kind: input, shape index: {}]
  %s2 = inlined_call_operand.hbm [shape: f32[1,8], index: 2, kind: output, shape index: {}]
  %s3 = sld [smem:[#allocation0]]
  $region26: #{tpu_custom_call.1} parent=0
    _
  %s5 = ssub.s32 1, %s3
  %s6 = scalar_select 0, %s5, %s3
  $region1: #{tpu_custom_call.1} parent=0
    #allocation2 [shape = 'u8[4096]{0}', space=vmem, size = 0x1000, scoped, tag = 'input window, operand 0, single buffered']
    #allocation3 [shape = 's32[1]{0}', space=sflag, size = 0x4, scoped, tag = 'scoped memory for tpu_custom_call.1']
    #allocation4 [shape = 's32[1]{0}', space=sflag, size = 0x4, scoped, tag = 'scoped memory for tpu_custom_call.1']
    #allocation5 [shape = 'u8[4096]{0}', space=vmem, size = 0x1000, scoped, tag = 'input window, operand 1, single buffered']
    #allocation6 [shape = 's32[1]{0}', space=sflag, size = 0x4, scoped, tag = 'scoped memory for tpu_custom_call.1']
    #allocation7 [shape = 'u8[512]{0}', space=vmem, size = 0x400, scoped, tag = 'output window, operand 0, single buffered']
    %7 = vsyncpa [#allocation3], 0
    %8 = vsyncpa [#allocation6], 0
    %9 = vsyncpa [#allocation4], 0
    // Predicated region
    $region2: #{tpu_custom_call.1} parent=1 // pred_check
      _
    $region3: #{tpu_custom_call.1} parent=1 // pred_check_branch
      %11 = sbr.rel (0) target = $region5
    $region4: #{tpu_custom_call.1} parent=1 // pred_region
      %s13 = ssub.s32 128, 128
      %14 = vsyncadd [#allocation3], %s13
      %s16 = sshll.u32 [#allocation2], 4
      %s17 = int_to_ptr.vmem [resolvable:$true] %s16
      %19 = dma.hbm_to_vmem [thread:$0]  %s0, 128, %s17, [#allocation3]
    $region5: #{tpu_custom_call.1} parent=1 // pred_fallthru
      _
    // Predicated region
    $region6: #{tpu_custom_call.1} parent=1 // pred_check
      _
    $region7: #{tpu_custom_call.1} parent=1 // pred_check_branch
      %21 = sbr.rel (0) target = $region9
    $region8: #{tpu_custom_call.1} parent=1 // pred_region
      %s23 = ssub.s32 128, 128
      %24 = vsyncadd [#allocation6], %s23
      %s26 = sshll.u32 [#allocation5], 4
      %s27 = int_to_ptr.vmem [resolvable:$true] %s26
      %29 = dma.hbm_to_vmem [thread:$0]  %s1, 128, %s27, [#allocation6]
    $region9: #{tpu_custom_call.1} parent=1 // pred_fallthru
      _
    // Predicated region
    $region10: #{tpu_custom_call.1} parent=1 // pred_check
      _
    $region11: #{tpu_custom_call.1} parent=1 // pred_check_branch
      %31 = sbr.rel (0) target = $region13
    $region12: #{tpu_custom_call.1} parent=1 // pred_region
      %32 = dma.done [#allocation3], 128
    $region13: #{tpu_custom_call.1} parent=1 // pred_fallthru
      _
    // Predicated region
    $region14: #{tpu_custom_call.1} parent=1 // pred_check
      _
    $region15: #{tpu_custom_call.1} parent=1 // pred_check_branch
      %34 = sbr.rel (0) target = $region17
    $region16: #{tpu_custom_call.1} parent=1 // pred_region
      %35 = dma.done [#allocation6], 128
    $region17: #{tpu_custom_call.1} parent=1 // pred_fallthru
      _
    %v36 = vld [vmem:[#allocation2] sm:$0xff]
    %v37 = vld [vmem:[#allocation5] sm:$0xff]
    %v38 = vmul.f32 %v36, %v37
    %39 = vadd.xlane.f32.xlu0 %v38
    %v40 = vpop.xlane.xlu0 %39
    %v41 = vmul.f32 %v36, %v36
    %42 = vadd.xlane.f32.xlu0 %v41
    %v43 = vpop.xlane.xlu0 %42
    %v44 = vmul.f32 %v37, %v37
    %45 = vadd.xlane.f32.xlu0 %v44
    %v46 = vpop.xlane.xlu0 %45
    %v47 = vmax.f32 %v43, 1e-16
    %v48 = vrsqrt.pop %v47
    %v49 = vmax.f32 %v46, 1e-16
    %v50 = vrsqrt.pop %v49
    %v51 = vmul.f32 %v48, %v50
    %v52 = vmul.f32 %v40, %v51
    %v53 = vsub.f32 1.0, %v52
    %v55 = vlaneseq
    %v56 = vand.u32 %v55, 127
    %v57 = vlaneseq
    %v58 = vshrl.u32 %v57, 7
    %v59 = vsub.s32 %v56, %v58
    %v60 = vrot.slane %v53, %v59
    %vm62 = vcmask 57344
    %63 = vst.msk [vmem:[#allocation7] sm:$0x1] %vm62, %v60
    // Predicated region
    $region18: #{tpu_custom_call.1} parent=1 // pred_check
      _
    $region19: #{tpu_custom_call.1} parent=1 // pred_check_branch
      %65 = sbr.rel (0) target = $region21
    $region20: #{tpu_custom_call.1} parent=1 // pred_region
      %s67 = ssub.s32 16, 16
      %68 = vsyncadd [#allocation4], %s67
      %s70 = sshll.u32 [#allocation7], 4
      %s71 = int_to_ptr.vmem [resolvable:$true] %s70
      %73 = dma.vmem_to_hbm [thread:$0]  %s71, 16, %s2, [#allocation4]
    $region21: #{tpu_custom_call.1} parent=1 // pred_fallthru
      _
    // Predicated region
    $region22: #{tpu_custom_call.1} parent=1 // pred_check
      _
    $region23: #{tpu_custom_call.1} parent=1 // pred_check_branch
      %75 = sbr.rel (0) target = $region25
    $region24: #{tpu_custom_call.1} parent=1 // pred_region
      %76 = dma.done [#allocation4], 16
    $region25: #{tpu_custom_call.1} parent=1 // pred_fallthru
      _
    %77 = vsyncpa [#allocation3], 1
    %78 = vsyncpa [#allocation6], 1
    %79 = vsyncpa [#allocation4], 1

</llo_original>
